<compile_context>
chip_gen: v7x
topology: tpu7x:2x2x1
jax: 0.10.0
libtpu: 0.0.40
codegen_flags: <defaults>
</compile_context>

<pallas_src>
import functools

import jax
import jax.numpy as jnp
from jax.experimental import pallas as pl
from jax.experimental.pallas import tpu as pltpu


def _posenc_kernel(om_ref, relpos_ref, maskemb_ref, out_ref, *, max_rel):
    # om_ref:      (TILE_N, 2) int32   -- column 0 = offset, column 1 = mask
    # relpos_ref:  (V_rel, D) float32
    # maskemb_ref: (2, D)     float32
    # out_ref:     (TILE_N, D) float32
    tile_n = om_ref.shape[0]
    v_rel = relpos_ref.shape[0]

    om = om_ref[...]                                          # (TILE_N, 2)
    d = jnp.clip(om[:, 0:1] + max_rel, 0, 2 * max_rel)        # (TILE_N, 1) int32
    m = om[:, 1:2].astype(jnp.float32)                        # (TILE_N, 1) f32

    # Relpos gather as one-hot @ table on the MXU (2D iota required on TPU).
    rel_iota = jax.lax.broadcasted_iota(jnp.int32, (tile_n, v_rel), 1)
    rel_oh = (d == rel_iota).astype(jnp.float32)              # (TILE_N, V_rel)
    e_rel = jnp.dot(rel_oh, relpos_ref[...],
                    preferred_element_type=jnp.float32)       # (TILE_N, D)

    # Mask gather as a VPU blend between the two table rows (mask is binary,
    # so multiply-by-{0.0,1.0} reproduces the embedding lookup exactly).
    row0 = maskemb_ref[0:1, :]                                # (1, D)
    row1 = maskemb_ref[1:2, :]                                # (1, D)
    e_msk = row0 + m * (row1 - row0)                          # (TILE_N, D)

    out_ref[...] = e_rel + e_msk


def positional_encodings(offset, mask, relpos_table, mask_table,
                         max_relative_feature=32, tile_n=4096):
    """offset, mask: integer arrays of identical shape (...,); mask in {0,1}.
    relpos_table: (2*max_relative_feature+1, D) float32
    mask_table:   (2, D) float32
    Returns float32 array of shape offset.shape + (D,)."""
    orig_shape = offset.shape
    v_rel, d_model = relpos_table.shape
    assert v_rel == 2 * max_relative_feature + 1
    assert mask_table.shape == (2, d_model)

    n = 1
    for s in orig_shape:
        n *= s

    # Row tile: multiple of 8 sublanes; clamp to the (8-padded) problem size so
    # small inputs do not over-pad.  For large inputs keep grid >= 2 (v7x has
    # two TensorCores sharing the parallel grid axis).
    tile = max(8, (int(tile_n) // 8) * 8)
    n8 = ((n + 7) // 8) * 8
    if n8 <= tile:
        tile = n8
    n_pad = ((n + tile - 1) // tile) * tile

    # Pack offset|mask into one int32 stream: (n, 2) -> padded (n_pad, 2).
    om = jnp.stack([offset.reshape(-1).astype(jnp.int32),
                    mask.reshape(-1).astype(jnp.int32)], axis=-1)
    if n_pad != n:
        om = jnp.pad(om, ((0, n_pad - n), (0, 0)))

    grid = (n_pad // tile,)

    out = pl.pallas_call(
        functools.partial(_posenc_kernel, max_rel=max_relative_feature),
        out_shape=jax.ShapeDtypeStruct((n_pad, d_model), jnp.float32),
        grid_spec=pltpu.PrefetchScalarGridSpec(
            num_scalar_prefetch=0,
            grid=grid,
            in_specs=[
                pl.BlockSpec((tile, 2), lambda i: (i, 0)),          # offset|mask
                pl.BlockSpec((v_rel, d_model), lambda i: (0, 0)),   # relpos table
                pl.BlockSpec((2, d_model), lambda i: (0, 0)),       # mask table
            ],
            out_specs=pl.BlockSpec((tile, d_model), lambda i: (i, 0)),
        ),
        compiler_params=pltpu.CompilerParams(
            dimension_semantics=("parallel",)),
    )(om, relpos_table, mask_table)

    if n_pad != n:
        out = out[:n]
    return out.reshape(orig_shape + (d_model,))


def _reference(offset, mask, relpos_table, mask_table, max_rel):
    d = jnp.clip(offset + max_rel, 0, 2 * max_rel)
    return relpos_table[d] + mask_table[mask]


if __name__ == "__main__":
    key = jax.random.PRNGKey(0)
    k1, k2, k3, k4 = jax.random.split(key, 4)

    max_relative_feature = 32
    num_embeddings = 32          # embedding dim D
    B, L, K = 2, 8, 8            # offset shape (B, L, K) as in ProteinMPNN relpos

    # Deterministic parameter init (nn.Embedding default: N(0, 1)).
    relpos_table = jax.random.normal(
        k1, (2 * max_relative_feature + 1, num_embeddings), jnp.float32)
    mask_table = jax.random.normal(k2, (2, num_embeddings), jnp.float32)

    # Deterministic inputs: integer offsets (can be negative / out of range),
    # binary mask.
    offset = jax.random.randint(k3, (B, L, K), -40, 41, dtype=jnp.int32)
    mask = jax.random.randint(k4, (B, L, K), 0, 2, dtype=jnp.int32)

    # Main check (single-tile path).
    out = positional_encodings(offset, mask, relpos_table, mask_table,
                               max_relative_feature=max_relative_feature)
    out = jax.block_until_ready(out)
    ref = _reference(offset, mask, relpos_table, mask_table,
                     max_relative_feature)
    assert out.shape == (B, L, K, num_embeddings)
    assert jnp.allclose(out, ref, atol=1e-5, rtol=1e-5)

    # Multi-step-grid path (forces grid > 1 with a small tile).
    out2 = positional_encodings(offset, mask, relpos_table, mask_table,
                                max_relative_feature=max_relative_feature,
                                tile_n=64)
    out2 = jax.block_until_ready(out2)
    assert jnp.allclose(out2, ref, atol=1e-5, rtol=1e-5)

    # Padding path (row count not a multiple of 8).
    off3 = offset.reshape(-1)[:126].reshape(2, 7, 9)
    msk3 = mask.reshape(-1)[:126].reshape(2, 7, 9)
    out3 = positional_encodings(off3, msk3, relpos_table, mask_table,
                                max_relative_feature=max_relative_feature)
    out3 = jax.block_until_ready(out3)
    ref3 = _reference(off3, msk3, relpos_table, mask_table,
                      max_relative_feature)
    assert out3.shape == (2, 7, 9, num_embeddings)
    assert jnp.allclose(out3, ref3, atol=1e-5, rtol=1e-5)

    print("KERNEL_OK")
</pallas_src>

<mosaic_0001>
module attributes {stable_mosaic.version = 11 : i64} {
  func.func @_posenc_kernel(%arg0: i32, %arg1: memref<128x2xi32, #tpu.memory_space<vmem>>, %arg2: memref<65x32xf32, #tpu.memory_space<vmem>>, %arg3: memref<2x32xf32, #tpu.memory_space<vmem>>, %arg4: memref<128x32xf32, #tpu.memory_space<vmem>>) attributes {dimension_semantics = [#tpu.dimension_semantics<parallel>], iteration_bounds = array<i64: 1>, scalar_prefetch = 0 : i64, scratch_operands = 0 : i64, tpu.core_type = #tpu.core_type<tc>, window_params = [{transform_indices = @transform_0, window_bounds = array<i64: 128, 2>}, {pipeline_mode = #tpu.pipeline_mode<synchronous>, transform_indices = @transform_1, window_bounds = array<i64: 65, 32>}, {pipeline_mode = #tpu.pipeline_mode<synchronous>, transform_indices = @transform_2, window_bounds = array<i64: 2, 32>}, {transform_indices = @transform_3, window_bounds = array<i64: 128, 32>}]} {
    %c0 = arith.constant 0 : index
    %c0_0 = arith.constant 0 : index
    %0 = vector.load %arg1[%c0, %c0_0] : memref<128x2xi32, #tpu.memory_space<vmem>>, vector<128x2xi32>
    %1 = vector.extract_strided_slice %0 {offsets = [0, 0], sizes = [128, 1], strides = [1, 1]} : vector<128x2xi32> to vector<128x1xi32>
    %c32_i32 = arith.constant 32 : i32
    %2 = vector.broadcast %c32_i32 : i32 to vector<128x1xi32>
    %3 = arith.addi %1, %2 : vector<128x1xi32>
    %c0_i32 = arith.constant 0 : i32
    %c64_i32 = arith.constant 64 : i32
    %4 = vector.broadcast %c0_i32 : i32 to vector<128x1xi32>
    %5 = arith.maxsi %4, %3 : vector<128x1xi32>
    %6 = vector.broadcast %c64_i32 : i32 to vector<128x1xi32>
    %7 = arith.minsi %6, %5 : vector<128x1xi32>
    %8 = vector.extract_strided_slice %0 {offsets = [0, 1], sizes = [128, 1], strides = [1, 1]} : vector<128x2xi32> to vector<128x1xi32>
    %9 = arith.sitofp %8 : vector<128x1xi32> to vector<128x1xf32>
    %10 = tpu.iota {dimensions = array<i32: 1>} : vector<128x65xi32>
    %11 = vector.broadcast %7 : vector<128x1xi32> to vector<128x65xi32>
    %12 = arith.cmpi eq, %11, %10 : vector<128x65xi32>
    %13 = arith.extui %12 : vector<128x65xi1> to vector<128x65xi32>
    %14 = arith.sitofp %13 : vector<128x65xi32> to vector<128x65xf32>
    %c0_1 = arith.constant 0 : index
    %c0_2 = arith.constant 0 : index
    %15 = vector.load %arg2[%c0_1, %c0_2] : memref<65x32xf32, #tpu.memory_space<vmem>>, vector<65x32xf32>
    %cst = arith.constant dense<0.000000e+00> : vector<128x32xf32>
    %16 = tpu.matmul %14, %15, %cst {dimension_numbers = #tpu.dot_dimension_numbers<[1], [0], [0], [1], [0, 0, 1, 1], [], []>} : vector<128x65xf32>, vector<65x32xf32>, vector<128x32xf32> -> vector<128x32xf32>
    %c0_3 = arith.constant 0 : index
    %c0_4 = arith.constant 0 : index
    %17 = vector.load %arg3[%c0_3, %c0_4] : memref<2x32xf32, #tpu.memory_space<vmem>>, vector<1x32xf32>
    %c1 = arith.constant 1 : index
    %c0_5 = arith.constant 0 : index
    %18 = vector.load %arg3[%c1, %c0_5] : memref<2x32xf32, #tpu.memory_space<vmem>>, vector<1x32xf32>
    %19 = arith.subf %18, %17 : vector<1x32xf32>
    %20 = vector.broadcast %9 : vector<128x1xf32> to vector<128x32xf32>
    %21 = vector.broadcast %19 : vector<1x32xf32> to vector<128x32xf32>
    %22 = arith.mulf %20, %21 : vector<128x32xf32>
    %23 = vector.broadcast %17 : vector<1x32xf32> to vector<128x32xf32>
    %24 = arith.addf %23, %22 : vector<128x32xf32>
    %25 = arith.addf %16, %24 : vector<128x32xf32>
    %c0_6 = arith.constant 0 : index
    %c0_7 = arith.constant 0 : index
    %26 = vector.load %arg4[%c0_6, %c0_7] : memref<128x32xf32, #tpu.memory_space<vmem>>, vector<128x32xf32>
    tpu.vector_store %arg4[%c0_6, %c0_7], %25 {strides = array<i32>} : memref<128x32xf32, #tpu.memory_space<vmem>>, vector<128x32xf32>,
    return
  }
  func.func @transform_0(%arg0: i32) -> (i32, i32) {
    %c0_i32 = arith.constant 0 : i32
    %c0_i32_0 = arith.constant 0 : i32
    return %arg0, %c0_i32 : i32, i32
  }
  func.func @transform_1(%arg0: i32) -> (i32, i32) {
    %c0_i32 = arith.constant 0 : i32
    %c0_i32_0 = arith.constant 0 : i32
    %c0_i32_1 = arith.constant 0 : i32
    return %c0_i32, %c0_i32_0 : i32, i32
  }
  func.func @transform_2(%arg0: i32) -> (i32, i32) {
    %c0_i32 = arith.constant 0 : i32
    %c0_i32_0 = arith.constant 0 : i32
    %c0_i32_1 = arith.constant 0 : i32
    return %c0_i32, %c0_i32_0 : i32, i32
  }
  func.func @transform_3(%arg0: i32) -> (i32, i32) {
    %c0_i32 = arith.constant 0 : i32
    %c0_i32_0 = arith.constant 0 : i32
    return %arg0, %c0_i32 : i32, i32
  }
}

</mosaic_0001>

<llo_original>
// kernel: tpu_custom_call.1
$region0: #{tpu_custom_call.1}
  #allocation0 [shape = 'u32[]', space=smem, size = 0x4, offset = 0x4, fixed_abs, tag = 'smem constant byte address 0x4 - core index']
  #allocation1 [shape = 'u32[144,128]{1,0:T(1,128)}', space=vmem, size = 0x12000, scoped, tag = 'internal scratch']
  %s0 = inlined_call_operand.vmem [shape: s32[128,2], index: 0, kind: input, shape index: {}]
  %s1 = inlined_call_operand.vmem [shape: f32[65,32], index: 1, kind: input, shape index: {}]
  %s2 = inlined_call_operand.vmem [shape: f32[2,32], index: 2, kind: input, shape index: {}]
  %s3 = inlined_call_operand.vmem [shape: f32[128,32], index: 3, kind: output, shape index: {}]
  %s4 = sld [smem:[#allocation0]]
  $region22: #{tpu_custom_call.1} parent=0
    _
  %s6 = ssub.s32 1, %s4
  %s7 = scalar_select 0, %s6, %s4
  // Predicated region
  $region2: #{tpu_custom_call.1} parent=0 // pred_check
    _
  $region3: #{tpu_custom_call.1} parent=0 // pred_check_branch
    %9 = sbr.rel (0) target = $region5
  $region4: #{tpu_custom_call.1} parent=0 // pred_region
    _
  $region5: #{tpu_custom_call.1} parent=0 // pred_fallthru
    _
  // Predicated region
  $region6: #{tpu_custom_call.1} parent=0 // pred_check
    _
  $region7: #{tpu_custom_call.1} parent=0 // pred_check_branch
    %11 = sbr.rel (0) target = $region9
  $region8: #{tpu_custom_call.1} parent=0 // pred_region
    _
  $region9: #{tpu_custom_call.1} parent=0 // pred_fallthru
    _
  // Predicated region
  $region10: #{tpu_custom_call.1} parent=0 // pred_check
    _
  $region11: #{tpu_custom_call.1} parent=0 // pred_check_branch
    %13 = sbr.rel (0) target = $region13
  $region12: #{tpu_custom_call.1} parent=0 // pred_region
    _
  $region13: #{tpu_custom_call.1} parent=0 // pred_fallthru
    _
  %v14 = vld [vmem:[%s0] sm:$0xff]
  %v15 = vld [vmem:[%s0 + $0x8] sm:$0xff]
  %v16 = vld [vmem:[%s0 + $0x10] sm:$0xff]
  %v17 = vld [vmem:[%s0 + $0x18] sm:$0xff]
  %v18 = vld [vmem:[%s0 + $0x20] sm:$0xff]
  %v19 = vld [vmem:[%s0 + $0x28] sm:$0xff]
  %v20 = vld [vmem:[%s0 + $0x30] sm:$0xff]
  %v21 = vld [vmem:[%s0 + $0x38] sm:$0xff]
  %v22 = vld [vmem:[%s0 + $0x40] sm:$0xff]
  %v23 = vld [vmem:[%s0 + $0x48] sm:$0xff]
  %v24 = vld [vmem:[%s0 + $0x50] sm:$0xff]
  %v25 = vld [vmem:[%s0 + $0x58] sm:$0xff]
  %v26 = vld [vmem:[%s0 + $0x60] sm:$0xff]
  %v27 = vld [vmem:[%s0 + $0x68] sm:$0xff]
  %v28 = vld [vmem:[%s0 + $0x70] sm:$0xff]
  %v29 = vld [vmem:[%s0 + $0x78] sm:$0xff]
  %v30 = vadd.s32 %v14, 32
  %v31 = vadd.s32 %v15, 32
  %v32 = vadd.s32 %v16, 32
  %v33 = vadd.s32 %v17, 32
  %v34 = vadd.s32 %v18, 32
  %v35 = vadd.s32 %v19, 32
  %v36 = vadd.s32 %v20, 32
  %v37 = vadd.s32 %v21, 32
  %v38 = vadd.s32 %v22, 32
  %v39 = vadd.s32 %v23, 32
  %v40 = vadd.s32 %v24, 32
  %v41 = vadd.s32 %v25, 32
  %v42 = vadd.s32 %v26, 32
  %v43 = vadd.s32 %v27, 32
  %v44 = vadd.s32 %v28, 32
  %v45 = vadd.s32 %v29, 32
  %vm46 = vcmp.gt.s32.totalorder %v30, 0
  %v47 = vsel %vm46, %v30, 0
  %vm48 = vcmp.gt.s32.totalorder %v31, 0
  %v49 = vsel %vm48, %v31, 0
  %vm50 = vcmp.gt.s32.totalorder %v32, 0
  %v51 = vsel %vm50, %v32, 0
  %vm52 = vcmp.gt.s32.totalorder %v33, 0
  %v53 = vsel %vm52, %v33, 0
  %vm54 = vcmp.gt.s32.totalorder %v34, 0
  %v55 = vsel %vm54, %v34, 0
  %vm56 = vcmp.gt.s32.totalorder %v35, 0
  %v57 = vsel %vm56, %v35, 0
  %vm58 = vcmp.gt.s32.totalorder %v36, 0
  %v59 = vsel %vm58, %v36, 0
  %vm60 = vcmp.gt.s32.totalorder %v37, 0
  %v61 = vsel %vm60, %v37, 0
  %vm62 = vcmp.gt.s32.totalorder %v38, 0
  %v63 = vsel %vm62, %v38, 0
  %vm64 = vcmp.gt.s32.totalorder %v39, 0
  %v65 = vsel %vm64, %v39, 0
  %vm66 = vcmp.gt.s32.totalorder %v40, 0
  %v67 = vsel %vm66, %v40, 0
  %vm68 = vcmp.gt.s32.totalorder %v41, 0
  %v69 = vsel %vm68, %v41, 0
  %vm70 = vcmp.gt.s32.totalorder %v42, 0
  %v71 = vsel %vm70, %v42, 0
  %vm72 = vcmp.gt.s32.totalorder %v43, 0
  %v73 = vsel %vm72, %v43, 0
  %vm74 = vcmp.gt.s32.totalorder %v44, 0
  %v75 = vsel %vm74, %v44, 0
  %vm76 = vcmp.gt.s32.totalorder %v45, 0
  %v77 = vsel %vm76, %v45, 0
  %vm78 = vcmp.lt.s32.totalorder %v47, 64
  %v79 = vsel %vm78, %v47, 64
  %vm80 = vcmp.lt.s32.totalorder %v49, 64
  %v81 = vsel %vm80, %v49, 64
  %vm82 = vcmp.lt.s32.totalorder %v51, 64
  %v83 = vsel %vm82, %v51, 64
  %vm84 = vcmp.lt.s32.totalorder %v53, 64
  %v85 = vsel %vm84, %v53, 64
  %vm86 = vcmp.lt.s32.totalorder %v55, 64
  %v87 = vsel %vm86, %v55, 64
  %vm88 = vcmp.lt.s32.totalorder %v57, 64
  %v89 = vsel %vm88, %v57, 64
  %vm90 = vcmp.lt.s32.totalorder %v59, 64
  %v91 = vsel %vm90, %v59, 64
  %vm92 = vcmp.lt.s32.totalorder %v61, 64
  %v93 = vsel %vm92, %v61, 64
  %vm94 = vcmp.lt.s32.totalorder %v63, 64
  %v95 = vsel %vm94, %v63, 64
  %vm96 = vcmp.lt.s32.totalorder %v65, 64
  %v97 = vsel %vm96, %v65, 64
  %vm98 = vcmp.lt.s32.totalorder %v67, 64
  %v99 = vsel %vm98, %v67, 64
  %vm100 = vcmp.lt.s32.totalorder %v69, 64
  %v101 = vsel %vm100, %v69, 64
  %vm102 = vcmp.lt.s32.totalorder %v71, 64
  %v103 = vsel %vm102, %v71, 64
  %vm104 = vcmp.lt.s32.totalorder %v73, 64
  %v105 = vsel %vm104, %v73, 64
  %vm106 = vcmp.lt.s32.totalorder %v75, 64
  %v107 = vsel %vm106, %v75, 64
  %vm108 = vcmp.lt.s32.totalorder %v77, 64
  %v109 = vsel %vm108, %v77, 64
  %v110 = vcvt.s32.f32 %v14
  %v111 = vcvt.s32.f32 %v15
  %v112 = vcvt.s32.f32 %v16
  %v113 = vcvt.s32.f32 %v17
  %v114 = vcvt.s32.f32 %v18
  %v115 = vcvt.s32.f32 %v19
  %v116 = vcvt.s32.f32 %v20
  %v117 = vcvt.s32.f32 %v21
  %v118 = vcvt.s32.f32 %v22
  %v119 = vcvt.s32.f32 %v23
  %v120 = vcvt.s32.f32 %v24
  %v121 = vcvt.s32.f32 %v25
  %v122 = vcvt.s32.f32 %v26
  %v123 = vcvt.s32.f32 %v27
  %v124 = vcvt.s32.f32 %v28
  %v125 = vcvt.s32.f32 %v29
  %v126 = vlaneseq
  %v127 = vand.u32 %v126, 127
  %128 = vset.pattern.permute.xlu0 0
  %129 = vperm.xlu0 %128, %v79
  %v130 = vpop.permute.xlu0 %129
  %131 = vset.pattern.permute.xlu0 0
  %132 = vperm.xlu0 %131, %v81
  %v133 = vpop.permute.xlu0 %132
  %134 = vset.pattern.permute.xlu0 0
  %135 = vperm.xlu0 %134, %v83
  %v136 = vpop.permute.xlu0 %135
  %137 = vset.pattern.permute.xlu0 0
  %138 = vperm.xlu0 %137, %v85
  %v139 = vpop.permute.xlu0 %138
  %140 = vset.pattern.permute.xlu0 0
  %141 = vperm.xlu0 %140, %v87
  %v142 = vpop.permute.xlu0 %141
  %143 = vset.pattern.permute.xlu0 0
  %144 = vperm.xlu0 %143, %v89
  %v145 = vpop.permute.xlu0 %144
  %146 = vset.pattern.permute.xlu0 0
  %147 = vperm.xlu0 %146, %v91
  %v148 = vpop.permute.xlu0 %147
  %149 = vset.pattern.permute.xlu0 0
  %150 = vperm.xlu0 %149, %v93
  %v151 = vpop.permute.xlu0 %150
  %152 = vset.pattern.permute.xlu0 0
  %153 = vperm.xlu0 %152, %v95
  %v154 = vpop.permute.xlu0 %153
  %155 = vset.pattern.permute.xlu0 0
  %156 = vperm.xlu0 %155, %v97
  %v157 = vpop.permute.xlu0 %156
  %158 = vset.pattern.permute.xlu0 0
  %159 = vperm.xlu0 %158, %v99
  %v160 = vpop.permute.xlu0 %159
  %161 = vset.pattern.permute.xlu0 0
  %162 = vperm.xlu0 %161, %v101
  %v163 = vpop.permute.xlu0 %162
  %164 = vset.pattern.permute.xlu0 0
  %165 = vperm.xlu0 %164, %v103
  %v166 = vpop.permute.xlu0 %165
  %167 = vset.pattern.permute.xlu0 0
  %168 = vperm.xlu0 %167, %v105
  %v169 = vpop.permute.xlu0 %168
  %170 = vset.pattern.permute.xlu0 0
  %171 = vperm.xlu0 %170, %v107
  %v172 = vpop.permute.xlu0 %171
  %173 = vset.pattern.permute.xlu0 0
  %174 = vperm.xlu0 %173, %v109
  %v175 = vpop.permute.xlu0 %174
  %vm176 = vcmp.eq.s32.totalorder %v130, %v127
  %vm177 = vcmp.eq.s32.totalorder %v133, %v127
  %vm178 = vcmp.eq.s32.totalorder %v136, %v127
  %vm179 = vcmp.eq.s32.totalorder %v139, %v127
  %vm180 = vcmp.eq.s32.totalorder %v142, %v127
  %vm181 = vcmp.eq.s32.totalorder %v145, %v127
  %vm182 = vcmp.eq.s32.totalorder %v148, %v127
  %vm183 = vcmp.eq.s32.totalorder %v151, %v127
  %vm184 = vcmp.eq.s32.totalorder %v154, %v127
  %vm185 = vcmp.eq.s32.totalorder %v157, %v127
  %vm186 = vcmp.eq.s32.totalorder %v160, %v127
  %vm187 = vcmp.eq.s32.totalorder %v163, %v127
  %vm188 = vcmp.eq.s32.totalorder %v166, %v127
  %vm189 = vcmp.eq.s32.totalorder %v169, %v127
  %vm190 = vcmp.eq.s32.totalorder %v172, %v127
  %vm191 = vcmp.eq.s32.totalorder %v175, %v127
  %v192 = vsel %vm176, 1, 0
  %v193 = vsel %vm177, 1, 0
  %v194 = vsel %vm178, 1, 0
  %v195 = vsel %vm179, 1, 0
  %v196 = vsel %vm180, 1, 0
  %v197 = vsel %vm181, 1, 0
  %v198 = vsel %vm182, 1, 0
  %v199 = vsel %vm183, 1, 0
  %v200 = vsel %vm184, 1, 0
  %v201 = vsel %vm185, 1, 0
  %v202 = vsel %vm186, 1, 0
  %v203 = vsel %vm187, 1, 0
  %v204 = vsel %vm188, 1, 0
  %v205 = vsel %vm189, 1, 0
  %v206 = vsel %vm190, 1, 0
  %v207 = vsel %vm191, 1, 0
  %v208 = vcvt.s32.f32 %v192
  %v209 = vcvt.s32.f32 %v193
  %v210 = vcvt.s32.f32 %v194
  %v211 = vcvt.s32.f32 %v195
  %v212 = vcvt.s32.f32 %v196
  %v213 = vcvt.s32.f32 %v197
  %v214 = vcvt.s32.f32 %v198
  %v215 = vcvt.s32.f32 %v199
  %v216 = vcvt.s32.f32 %v200
  %v217 = vcvt.s32.f32 %v201
  %v218 = vcvt.s32.f32 %v202
  %v219 = vcvt.s32.f32 %v203
  %v220 = vcvt.s32.f32 %v204
  %v221 = vcvt.s32.f32 %v205
  %v222 = vcvt.s32.f32 %v206
  %v223 = vcvt.s32.f32 %v207
  %v224 = vld [vmem:[%s1] sm:$0xff]
  %v225 = vld [vmem:[%s1 + $0x8] sm:$0xff]
  %v226 = vld [vmem:[%s1 + $0x10] sm:$0xff]
  %v227 = vld [vmem:[%s1 + $0x18] sm:$0xff]
  %v228 = vld [vmem:[%s1 + $0x20] sm:$0xff]
  %v229 = vld [vmem:[%s1 + $0x28] sm:$0xff]
  %v230 = vld [vmem:[%s1 + $0x30] sm:$0xff]
  %v231 = vld [vmem:[%s1 + $0x38] sm:$0xff]
  %v232 = vld [vmem:[%s1 + $0x40] sm:$0x1]
  %v233 = vld [vmem:[%s2] sm:$0x1]
  %v234 = vld [vmem:[%s2 + $0x1] sm:$0x1]
  %v235 = vsub.f32 %v234, %v233
  %237 = vset.pattern.permute.xlu0 1
  %238 = vperm.xlu0 %237, %v110
  %v239 = vpop.permute.xlu0 %238
  %242 = vset.pattern.permute.xlu0 1
  %243 = vperm.xlu0 %242, %v111
  %v244 = vpop.permute.xlu0 %243
  %247 = vset.pattern.permute.xlu0 1
  %248 = vperm.xlu0 %247, %v112
  %v249 = vpop.permute.xlu0 %248
  %252 = vset.pattern.permute.xlu0 1
  %253 = vperm.xlu0 %252, %v113
  %v254 = vpop.permute.xlu0 %253
  %257 = vset.pattern.permute.xlu0 1
  %258 = vperm.xlu0 %257, %v114
  %v259 = vpop.permute.xlu0 %258
  %262 = vset.pattern.permute.xlu0 1
  %263 = vperm.xlu0 %262, %v115
  %v264 = vpop.permute.xlu0 %263
  %267 = vset.pattern.permute.xlu0 1
  %268 = vperm.xlu0 %267, %v116
  %v269 = vpop.permute.xlu0 %268
  %272 = vset.pattern.permute.xlu0 1
  %273 = vperm.xlu0 %272, %v117
  %v274 = vpop.permute.xlu0 %273
  %277 = vset.pattern.permute.xlu0 1
  %278 = vperm.xlu0 %277, %v118
  %v279 = vpop.permute.xlu0 %278
  %282 = vset.pattern.permute.xlu0 1
  %283 = vperm.xlu0 %282, %v119
  %v284 = vpop.permute.xlu0 %283
  %287 = vset.pattern.permute.xlu0 1
  %288 = vperm.xlu0 %287, %v120
  %v289 = vpop.permute.xlu0 %288
  %292 = vset.pattern.permute.xlu0 1
  %293 = vperm.xlu0 %292, %v121
  %v294 = vpop.permute.xlu0 %293
  %297 = vset.pattern.permute.xlu0 1
  %298 = vperm.xlu0 %297, %v122
  %v299 = vpop.permute.xlu0 %298
  %302 = vset.pattern.permute.xlu0 1
  %303 = vperm.xlu0 %302, %v123
  %v304 = vpop.permute.xlu0 %303
  %307 = vset.pattern.permute.xlu0 1
  %308 = vperm.xlu0 %307, %v124
  %v309 = vpop.permute.xlu0 %308
  %312 = vset.pattern.permute.xlu0 1
  %313 = vperm.xlu0 %312, %v125
  %v314 = vpop.permute.xlu0 %313
  %v316 = vlaneseq
  %v317 = vshrl.u32 %v316, 7
  %v318 = vsub.s32 0, %v317
  %v319 = vrot.slane %v235, %v318
  %v320 = vmul.f32 %v239, %v319
  %v321 = vmul.f32 %v244, %v319
  %v322 = vmul.f32 %v249, %v319
  %v323 = vmul.f32 %v254, %v319
  %v324 = vmul.f32 %v259, %v319
  %v325 = vmul.f32 %v264, %v319
  %v326 = vmul.f32 %v269, %v319
  %v327 = vmul.f32 %v274, %v319
  %v328 = vmul.f32 %v279, %v319
  %v329 = vmul.f32 %v284, %v319
  %v330 = vmul.f32 %v289, %v319
  %v331 = vmul.f32 %v294, %v319
  %v332 = vmul.f32 %v299, %v319
  %v333 = vmul.f32 %v304, %v319
  %v334 = vmul.f32 %v309, %v319
  %v335 = vmul.f32 %v314, %v319
  %v336 = vlaneseq
  %v337 = vshrl.u32 %v336, 7
  %v338 = vsub.s32 0, %v337
  %v339 = vrot.slane %v233, %v338
  %v340 = vadd.f32 %v339, %v320
  %v341 = vadd.f32 %v339, %v321
  %v342 = vadd.f32 %v339, %v322
  %v343 = vadd.f32 %v339, %v323
  %v344 = vadd.f32 %v339, %v324
  %v345 = vadd.f32 %v339, %v325
  %v346 = vadd.f32 %v339, %v326
  %v347 = vadd.f32 %v339, %v327
  %v348 = vadd.f32 %v339, %v328
  %v349 = vadd.f32 %v339, %v329
  %v350 = vadd.f32 %v339, %v330
  %v351 = vadd.f32 %v339, %v331
  %v352 = vadd.f32 %v339, %v332
  %v353 = vadd.f32 %v339, %v333
  %v354 = vadd.f32 %v339, %v334
  %v355 = vadd.f32 %v339, %v335
  %vm356 = vcmask 531456
  %v358 = vsel %vm356, %v208, 0
  %v361 = vsel %vm356, %v209, 0
  %v364 = vsel %vm356, %v210, 0
  %v367 = vsel %vm356, %v211, 0
  %v370 = vsel %vm356, %v212, 0
  %v373 = vsel %vm356, %v213, 0
  %v376 = vsel %vm356, %v214, 0
  %v379 = vsel %vm356, %v215, 0
  %v382 = vsel %vm356, %v216, 0
  %v385 = vsel %vm356, %v217, 0
  %v388 = vsel %vm356, %v218, 0
  %v391 = vsel %vm356, %v219, 0
  %v394 = vsel %vm356, %v220, 0
  %v397 = vsel %vm356, %v221, 0
  %v400 = vsel %vm356, %v222, 0
  %v403 = vsel %vm356, %v223, 0
  %vm405 = vcmask 1040384
  %v407 = vsel %vm405, %v232, 0
  %409 = vmatprep.subr.mxu0 0.0
  %410 = vmatpush1.msra.mxu0 %v224
  %411 = vmatprep.subr.mxu0 0.0
  %412 = vmatpush1.msra.mxu0 %v225
  %413 = vmatprep.subr.mxu0 0.0
  %414 = vmatpush1.msra.mxu0 %v226
  %415 = vmatprep.subr.mxu0 0.0
  %416 = vmatpush1.msra.mxu0 %v227
  %417 = vmatprep.subr.mxu0 0.0
  %418 = vmatpush1.msra.mxu0 %v228
  %419 = vmatprep.subr.mxu0 0.0
  %420 = vmatpush1.msra.mxu0 %v229
  %421 = vmatprep.subr.mxu0 0.0
  %422 = vmatpush1.msra.mxu0 %v230
  %423 = vmatprep.subr.mxu0 0.0
  %424 = vmatpush1.msra.mxu0 %v231
  %425 = vmatprep.subr.mxu0 0.0
  %426 = vmatpush1.msra.mxu0 %v407
  %427 = vmatprep.subr.mxu0 0.0
  %428 = vmatpush1.msra.mxu0 0.0
  %429 = vmatprep.subr.mxu0 0.0
  %430 = vmatpush1.msra.mxu0 0.0
  %431 = vmatprep.subr.mxu0 0.0
  %432 = vmatpush1.msra.mxu0 0.0
  %433 = vmatprep.subr.mxu0 0.0
  %434 = vmatpush1.msra.mxu0 0.0
  %435 = vmatprep.subr.mxu0 0.0
  %436 = vmatpush1.msra.mxu0 0.0
  %437 = vmatprep.subr.mxu0 0.0
  %438 = vmatpush1.msra.mxu0 0.0
  %439 = vmatprep.subr.mxu0 0.0
  %440 = vmatpush1.msra.mxu0 0.0
  %441 = vmatprep.subr.mxu0 0.0
  %442 = vmatpush1.msra.mxu0 0.0
  %443 = vmatprep.subr.mxu0 0.0
  %444 = vmatpush1.msra.mxu0 0.0
  %445 = vmatprep.subr.mxu0 0.0
  %446 = vmatpush1.msra.mxu0 0.0
  %447 = vmatprep.subr.mxu0 0.0
  %448 = vmatpush1.msra.mxu0 0.0
  %449 = vmatprep.subr.mxu0 0.0
  %450 = vmatpush1.msra.mxu0 0.0
  %451 = vmatprep.subr.mxu0 0.0
  %452 = vmatpush1.msra.mxu0 0.0
  %453 = vmatprep.subr.mxu0 0.0
  %454 = vmatpush1.msra.mxu0 0.0
  %455 = vmatprep.subr.mxu0 0.0
  %456 = vmatpush1.msra.mxu0 0.0
  %457 = vmatprep.subr.mxu0 0.0
  %458 = vmatpush1.msra.mxu0 0.0
  %459 = vmatprep.subr.mxu0 0.0
  %460 = vmatpush1.msra.mxu0 0.0
  %461 = vmatprep.subr.mxu0 0.0
  %462 = vmatpush1.msra.mxu0 0.0
  %463 = vmatprep.subr.mxu0 0.0
  %464 = vmatpush1.msra.mxu0 0.0
  %465 = vmatprep.subr.mxu0 0.0
  %466 = vmatpush1.msra.mxu0 0.0
  %467 = vmatprep.subr.mxu0 0.0
  %468 = vmatpush1.msra.mxu0 0.0
  %469 = vmatprep.subr.mxu0 0.0
  %470 = vmatpush1.msra.mxu0 0.0
  %471 = vmatprep.subr.mxu0 0.0
  %472 = vmatpush1.msra.mxu0 0.0
  %473 = vmatprep.mubr.f32.mxu0 0.0
  %474 = vmatmul.mubr.f32.gmra.mrb[0].mxu0 %v358
  %v475 = vpop.f32.mrb[0].mxu0
  %v476 = vadd.f32 %v340, %v475
  %v477 = vpop.f32.mrb[0].mxu0
  %478 = vmatprep.mubr.f32.mxu0 0.0
  %479 = vmatmul.mubr.f32.gmra.mrb[0].mxu0 %v361
  %v480 = vpop.f32.mrb[0].mxu0
  %v481 = vadd.f32 %v341, %v480
  %v482 = vpop.f32.mrb[0].mxu0
  %483 = vmatprep.mubr.f32.mxu0 0.0
  %484 = vmatmul.mubr.f32.gmra.mrb[0].mxu0 %v364
  %v485 = vpop.f32.mrb[0].mxu0
  %v486 = vadd.f32 %v342, %v485
  %v487 = vpop.f32.mrb[0].mxu0
  %488 = vmatprep.mubr.f32.mxu0 0.0
  %489 = vmatmul.mubr.f32.gmra.mrb[0].mxu0 %v367
  %v490 = vpop.f32.mrb[0].mxu0
  %v491 = vadd.f32 %v343, %v490
  %v492 = vpop.f32.mrb[0].mxu0
  %493 = vmatprep.mubr.f32.mxu0 0.0
  %494 = vmatmul.mubr.f32.gmra.mrb[0].mxu0 %v370
  %v495 = vpop.f32.mrb[0].mxu0
  %v496 = vadd.f32 %v344, %v495
  %v497 = vpop.f32.mrb[0].mxu0
  %498 = vmatprep.mubr.f32.mxu0 0.0
  %499 = vmatmul.mubr.f32.gmra.mrb[0].mxu0 %v373
  %v500 = vpop.f32.mrb[0].mxu0
  %v501 = vadd.f32 %v345, %v500
  %v502 = vpop.f32.mrb[0].mxu0
  %503 = vmatprep.mubr.f32.mxu0 0.0
  %504 = vmatmul.mubr.f32.gmra.mrb[0].mxu0 %v376
  %v505 = vpop.f32.mrb[0].mxu0
  %v506 = vadd.f32 %v346, %v505
  %v507 = vpop.f32.mrb[0].mxu0
  %508 = vmatprep.mubr.f32.mxu0 0.0
  %509 = vmatmul.mubr.f32.gmra.mrb[0].mxu0 %v379
  %v510 = vpop.f32.mrb[0].mxu0
  %v511 = vadd.f32 %v347, %v510
  %v512 = vpop.f32.mrb[0].mxu0
  %513 = vmatprep.mubr.f32.mxu0 0.0
  %514 = vmatmul.mubr.f32.gmra.mrb[0].mxu0 %v382
  %v515 = vpop.f32.mrb[0].mxu0
  %v516 = vadd.f32 %v348, %v515
  %v517 = vpop.f32.mrb[0].mxu0
  %518 = vmatprep.mubr.f32.mxu0 0.0
  %519 = vmatmul.mubr.f32.gmra.mrb[0].mxu0 %v385
  %v520 = vpop.f32.mrb[0].mxu0
  %v521 = vadd.f32 %v349, %v520
  %v522 = vpop.f32.mrb[0].mxu0
  %523 = vmatprep.mubr.f32.mxu0 0.0
  %524 = vmatmul.mubr.f32.gmra.mrb[0].mxu0 %v388
  %v525 = vpop.f32.mrb[0].mxu0
  %v526 = vadd.f32 %v350, %v525
  %v527 = vpop.f32.mrb[0].mxu0
  %528 = vmatprep.mubr.f32.mxu0 0.0
  %529 = vmatmul.mubr.f32.gmra.mrb[0].mxu0 %v391
  %v530 = vpop.f32.mrb[0].mxu0
  %v531 = vadd.f32 %v351, %v530
  %v532 = vpop.f32.mrb[0].mxu0
  %533 = vmatprep.mubr.f32.mxu0 0.0
  %534 = vmatmul.mubr.f32.gmra.mrb[0].mxu0 %v394
  %v535 = vpop.f32.mrb[0].mxu0
  %v536 = vadd.f32 %v352, %v535
  %v537 = vpop.f32.mrb[0].mxu0
  %538 = vmatprep.mubr.f32.mxu0 0.0
  %539 = vmatmul.mubr.f32.gmra.mrb[0].mxu0 %v397
  %v540 = vpop.f32.mrb[0].mxu0
  %v541 = vadd.f32 %v353, %v540
  %v542 = vpop.f32.mrb[0].mxu0
  %543 = vmatprep.mubr.f32.mxu0 0.0
  %544 = vmatmul.mubr.f32.gmra.mrb[0].mxu0 %v400
  %v545 = vpop.f32.mrb[0].mxu0
  %v546 = vadd.f32 %v354, %v545
  %v547 = vpop.f32.mrb[0].mxu0
  %548 = vmatprep.mubr.f32.mxu0 0.0
  %549 = vmatmul.mubr.f32.gmra.mrb[0].mxu0 %v403
  %v550 = vpop.f32.mrb[0].mxu0
  %v551 = vadd.f32 %v355, %v550
  %v552 = vpop.f32.mrb[0].mxu0
  %553 = vdwg.mxu0
  %vm554 = vcmask 261120
  %555 = vst.msk [vmem:[%s3] sm:$0xff] %vm554, %v476
  %556 = vst.msk [vmem:[%s3 + $0x8] sm:$0xff] %vm554, %v481
  %557 = vst.msk [vmem:[%s3 + $0x10] sm:$0xff] %vm554, %v486
  %558 = vst.msk [vmem:[%s3 + $0x18] sm:$0xff] %vm554, %v491
  %559 = vst.msk [vmem:[%s3 + $0x20] sm:$0xff] %vm554, %v496
  %560 = vst.msk [vmem:[%s3 + $0x28] sm:$0xff] %vm554, %v501
  %561 = vst.msk [vmem:[%s3 + $0x30] sm:$0xff] %vm554, %v506
  %562 = vst.msk [vmem:[%s3 + $0x38] sm:$0xff] %vm554, %v511
  %563 = vst.msk [vmem:[%s3 + $0x40] sm:$0xff] %vm554, %v516
  %564 = vst.msk [vmem:[%s3 + $0x48] sm:$0xff] %vm554, %v521
  %565 = vst.msk [vmem:[%s3 + $0x50] sm:$0xff] %vm554, %v526
  %566 = vst.msk [vmem:[%s3 + $0x58] sm:$0xff] %vm554, %v531
  %567 = vst.msk [vmem:[%s3 + $0x60] sm:$0xff] %vm554, %v536
  %568 = vst.msk [vmem:[%s3 + $0x68] sm:$0xff] %vm554, %v541
  %569 = vst.msk [vmem:[%s3 + $0x70] sm:$0xff] %vm554, %v546
  %570 = vst.msk [vmem:[%s3 + $0x78] sm:$0xff] %vm554, %v551
  // Predicated region
  $region14: #{tpu_custom_call.1} parent=0 // pred_check
    _
  $region15: #{tpu_custom_call.1} parent=0 // pred_check_branch
    %572 = sbr.rel (0) target = $region17
  $region16: #{tpu_custom_call.1} parent=0 // pred_region
    _
  $region17: #{tpu_custom_call.1} parent=0 // pred_fallthru
    _
  // Predicated region
  $region18: #{tpu_custom_call.1} parent=0 // pred_check
    _
  $region19: #{tpu_custom_call.1} parent=0 // pred_check_branch
    %574 = sbr.rel (0) target = $region21
  $region20: #{tpu_custom_call.1} parent=0 // pred_region
    _
  $region21: #{tpu_custom_call.1} parent=0 // pred_fallthru
    _

</llo_original>
